<compile_context>
chip_gen: v5e
topology: v5e:2x2
jax: 0.10.0
libtpu: 0.0.40
codegen_flags: <defaults>
</compile_context>

<pallas_src>
import jax
import jax.numpy as jnp
from jax import lax
from jax.experimental import pallas as pl
from jax.experimental.pallas import tpu as pltpu


def _round_up(x, m):
    return (x + m - 1) // m * m


def _unroll_for(L):
    # Full unroll only for short sequences; cap otherwise (64 vregs).
    return True if L <= 16 else 8


def _make_tf_kernel(L, Bp, H, Vp, w_dtype):
    """Teacher forcing: per-step work = h @ Wh + gate math + one [Bp,H] store.

    gx_ref holds precomputed x-side gate pre-activations (biases baked).
    Logits are computed AFTER the recurrence as one MXU-friendly matmul.
    """

    def kernel(gx_ref, wh_ref, bhn_ref, wlin_ref, blin_ref, h0_ref,
               hid_out, logit_out):
        wh = wh_ref[...]                                  # [H, 3H]
        wlin = wlin_ref[...]                              # [H, Vp]
        # Hoist bias broadcast out of the (unrolled) loop.
        bhn = jnp.broadcast_to(bhn_ref[...], (Bp, H))     # h-side n-gate bias

        def body(t, h):
            gx = gx_ref[t]                                # [Bp, 3H], f32
            hm = h.astype(w_dtype) if w_dtype != jnp.float32 else h
            gh = jnp.dot(hm, wh, preferred_element_type=jnp.float32)
            rz = jax.nn.sigmoid(gx[:, :2 * H] + gh[:, :2 * H])   # one EUP call
            r = rz[:, :H]
            z = rz[:, H:]
            n = jnp.tanh(gx[:, 2 * H:] + r * (gh[:, 2 * H:] + bhn))
            h_new = (1.0 - z) * n + z * h
            hid_out[pl.ds(t, 1), :, :] = h_new[None]
            return h_new

        lax.fori_loop(0, L, body, h0_ref[...], unroll=_unroll_for(L))

        # One big lane-dense (Vp >= 128) logits matmul for every (t, b).
        hid = hid_out[...].reshape(L * Bp, H)             # layout no-op reshape
        hm = hid.astype(w_dtype) if w_dtype != jnp.float32 else hid
        logits = jnp.dot(hm, wlin, preferred_element_type=jnp.float32)
        logits = logits + blin_ref[...]
        logit_out[...] = logits.reshape(L, Bp, Vp)

    return kernel


def _make_fr_kernel(L, Bp, H, Vp, w_dtype):
    """Free running: embedding table folded into the x-gate weights."""

    def kernel(gx0_ref, embw_ref, wh_ref, bhn_ref, wlin_ref, blin_ref, h0_ref,
               hid_out, logit_out):
        wh = wh_ref[...]                                  # [H, 3H]
        wlin = wlin_ref[...]                              # [H, Vp]
        embw = embw_ref[...]                              # [Vp, 3H] (bias baked)
        bhn = jnp.broadcast_to(bhn_ref[...], (Bp, H))     # hoisted
        blin = jnp.broadcast_to(blin_ref[...], (Bp, Vp))  # hoisted
        iota_v = lax.broadcasted_iota(jnp.int32, (Bp, Vp), 1)

        def cell(gx, h):
            hm = h.astype(w_dtype) if w_dtype != jnp.float32 else h
            gh = jnp.dot(hm, wh, preferred_element_type=jnp.float32)
            rz = jax.nn.sigmoid(gx[:, :2 * H] + gh[:, :2 * H])
            r = rz[:, :H]
            z = rz[:, H:]
            n = jnp.tanh(gx[:, 2 * H:] + r * (gh[:, 2 * H:] + bhn))
            h_new = (1.0 - z) * n + z * h
            hnm = h_new.astype(w_dtype) if w_dtype != jnp.float32 else h_new
            logit = jnp.dot(hnm, wlin, preferred_element_type=jnp.float32) + blin
            # first-max argmax (matches torch.argmax); padded columns carry a
            # -1e30 bias so they can never win.
            mx = jnp.max(logit, axis=1, keepdims=True)
            cand = jnp.where(logit == mx, iota_v, Vp)
            ids = jnp.min(cand, axis=1).astype(jnp.int32)  # [Bp]
            return h_new, logit, ids

        def store(t, h_new, logit):
            hid_out[pl.ds(t, 1), :, :] = h_new[None]
            logit_out[pl.ds(t, 1), :, :] = logit[None]

        # Step 0 peeled: uses the precomputed START-token gate contribution;
        # the sampled id of the final step is never embedded.
        h, logit0, ids = cell(gx0_ref[...], h0_ref[...])
        store(0, h, logit0)

        def body(t, carry):
            h_prev, prev_ids = carry
            onehot = (iota_v == prev_ids[:, None]).astype(embw.dtype)
            gx = jnp.dot(onehot, embw, preferred_element_type=jnp.float32)
            h_new, logit_t, ids_t = cell(gx, h_prev)
            store(t, h_new, logit_t)
            return (h_new, ids_t)

        lax.fori_loop(1, L, body, (h, ids), unroll=_unroll_for(L))

    return kernel


def decoder_forward(params, inputs, max_length, init_hidden, att_embedding,
                    weight_dtype=jnp.float32):
    """Pallas implementation of Decoder.forward.

    weight_dtype: dtype of the MXU matmul operands (weights + matmul inputs).
    Keep float32 for bit-faithful sampling; bfloat16 is a throughput/VMEM
    optimization (element-wise math, biases, accumulation stay f32).
    """
    B, T = inputs.shape
    V, E = params["embedding"].shape
    H = params["w_hh"].shape[1]            # w_hh: [3H, H]
    L = int(max_length)
    teacher_forcing = T > 1
    Bp = max(8, _round_up(B, 8))           # pad batch to sublane width
    Vp = max(128, _round_up(V, 128))       # lane-dense logits

    f32 = jnp.float32
    hi = jax.lax.Precision.HIGHEST
    emb_tbl = params["embedding"].astype(f32)

    # initial hidden = concat(init_hidden[0], att_embedding) -> [B, H], pad to Bp
    h0 = jnp.concatenate([init_hidden[0], att_embedding], axis=1).astype(f32)
    assert h0.shape == (B, H)
    h0 = jnp.pad(h0, ((0, Bp - B), (0, 0)))

    # Split gate weights: x-side [E,3H] (r,z,n_x), h-side [H,3H] (r,z,n_h).
    wx = params["w_ih"].T.astype(f32)                     # [E, 3H]
    wh = params["w_hh"].T.astype(f32)                     # [H, 3H]
    # x-side bias with the h-side r/z biases folded in (additive pre-sigmoid);
    # the h-side n bias must stay on the h side (multiplied by r).
    bx = jnp.concatenate([params["b_ih"][:2 * H] + params["b_hh"][:2 * H],
                          params["b_ih"][2 * H:3 * H]]).astype(f32)      # [3H]
    bhn = params["b_hh"][2 * H:3 * H].astype(f32)[None, :]               # [1, H]

    # Output projection padded to a lane-dense Vp; padded bias = -1e30.
    wlin = jnp.zeros((H, Vp), f32).at[:, :V].set(params["w_lin"].T.astype(f32))
    blin = jnp.full((Vp,), -1e30, f32).at[:V].set(params["b_lin"].astype(f32))[None, :]

    # Embedding folded into x-side gate weights (+ baked biases):
    # onehot @ emb_wx == emb[id] @ Wx + bx  (each one-hot row sums to 1).
    emb_wx = jnp.dot(emb_tbl, wx, precision=hi) + bx      # [V, 3H]

    wh_k = wh.astype(weight_dtype)
    wlin_k = wlin.astype(weight_dtype)

    def full(shape):
        nd = len(shape)
        return pl.BlockSpec(shape, lambda i, _nd=nd: (0,) * _nd)

    out_shape = (jax.ShapeDtypeStruct((L, Bp, H), f32),
                 jax.ShapeDtypeStruct((L, Bp, Vp), f32))
    out_specs = [full((L, Bp, H)), full((L, Bp, Vp))]

    common_w_specs = [full((H, 3 * H)), full((1, H)),
                      full((H, Vp)), full((1, Vp)), full((Bp, H))]

    cparams = pltpu.CompilerParams(
        dimension_semantics=("arbitrary",),      # single sequential grid step
        vmem_limit_bytes=32 * 1024 * 1024)

    if teacher_forcing:
        # Hoist all time-parallel work out of the recurrence: per-step x-gate
        # pre-activations (with biases baked) as one gather / matmul here.
        tok = inputs[:, :L].astype(jnp.int32)                 # [B, L]
        gx_all = jnp.take(emb_wx, tok, axis=0)                # [B, L, 3H]
        gx_all = jnp.transpose(gx_all, (1, 0, 2))             # [L, B, 3H]
        gx_all = jnp.pad(gx_all, ((0, 0), (0, Bp - B), (0, 0)))
        kernel = _make_tf_kernel(L, Bp, H, Vp, weight_dtype)
        grid_spec = pltpu.PrefetchScalarGridSpec(
            num_scalar_prefetch=0, grid=(1,),
            in_specs=[full((L, Bp, 3 * H))] + common_w_specs,
            out_specs=out_specs)
        outs = pl.pallas_call(
            kernel, grid_spec=grid_spec, out_shape=out_shape,
            compiler_params=cparams,
        )(gx_all, wh_k, bhn, wlin_k, blin, h0)
    else:
        # Only the START-token gate contribution is precomputed; sampled-id
        # gates come from onehot @ emb_wx in-kernel (table folded into gates).
        gx0 = jnp.take(emb_wx, inputs[:, 0].astype(jnp.int32), axis=0)  # [B,3H]
        gx0 = jnp.pad(gx0, ((0, Bp - B), (0, 0)))
        embw_p = jnp.pad(emb_wx, ((0, Vp - V), (0, 0))).astype(weight_dtype)
        kernel = _make_fr_kernel(L, Bp, H, Vp, weight_dtype)
        grid_spec = pltpu.PrefetchScalarGridSpec(
            num_scalar_prefetch=0, grid=(1,),
            in_specs=[full((Bp, 3 * H)), full((Vp, 3 * H))] + common_w_specs,
            out_specs=out_specs)
        outs = pl.pallas_call(
            kernel, grid_spec=grid_spec, out_shape=out_shape,
            compiler_params=cparams,
        )(gx0, embw_p, wh_k, bhn, wlin_k, blin, h0)

    hid_lbh, logit_lbvp = outs
    logit_lbv = logit_lbvp[:, :B, :V]                                # [L, B, V]
    hiddens = jnp.transpose(hid_lbh[:, :B, :], (1, 0, 2))            # [B, L, H]
    logits = jnp.transpose(logit_lbv, (1, 0, 2)).reshape(B * L, V)
    # argmax(softmax(x)) == argmax(x); first-max matches torch.argmax, and in
    # FR mode these are exactly the logits that drove the in-kernel feedback.
    sampled_ids = jnp.transpose(jnp.argmax(logit_lbv, axis=-1), (1, 0))
    sampled_ids = sampled_ids.astype(jnp.int32)                      # [B, L]
    return hiddens, logits, sampled_ids


def decoder_forward_ref(params, inputs, max_length, init_hidden, att_embedding):
    """Pure-JAX reference mirroring the PyTorch forward (f32)."""
    B, T = inputs.shape
    emb_tbl = params["embedding"]
    H = params["w_hh"].shape[1]
    h = jnp.concatenate([init_hidden[0], att_embedding], axis=1)
    embedded = emb_tbl[inputs]                                        # [B, T, E]
    hiddens, logits, ids = [], [], []
    x = embedded[:, 0, :]
    for t in range(max_length):
        gi = x @ params["w_ih"].T + params["b_ih"]
        gh = h @ params["w_hh"].T + params["b_hh"]
        r = jax.nn.sigmoid(gi[:, :H] + gh[:, :H])
        z = jax.nn.sigmoid(gi[:, H:2 * H] + gh[:, H:2 * H])
        n = jnp.tanh(gi[:, 2 * H:] + r * gh[:, 2 * H:])
        h = (1.0 - z) * n + z * h
        logit = h @ params["w_lin"].T + params["b_lin"]
        sid = jnp.argmax(logit, axis=1)
        hiddens.append(h)
        logits.append(logit)
        ids.append(sid)
        if T == 1:
            x = emb_tbl[sid]
        else:
            x = embedded[:, t + 1, :]
    hiddens = jnp.stack(hiddens, axis=1)                              # [B, L, H]
    logits = jnp.stack(logits, axis=1).reshape(B * max_length, -1)
    sampled_ids = jnp.stack(ids, axis=1)                              # [B, L]
    return hiddens, logits, sampled_ids


if __name__ == "__main__":
    # Small shapes: vocab=32, embedding=16, hidden=32 (= 24 init + 8 att), batch=2.
    B, V, E, H = 2, 32, 16, 32
    D_INIT, D_ATT = 24, 8
    MAX_LEN = 5

    key = jax.random.PRNGKey(0)
    ks = jax.random.split(key, 12)
    emb = jax.random.normal(ks[0], (V, E), jnp.float32) * 0.5
    emb = emb.at[0].set(0.0)  # padding_idx=0
    params = {
        "embedding": emb,
        "w_ih": jax.random.normal(ks[1], (3 * H, E), jnp.float32) * 0.1,
        "w_hh": jax.random.normal(ks[2], (3 * H, H), jnp.float32) * 0.1,
        "b_ih": jax.random.normal(ks[3], (3 * H,), jnp.float32) * 0.1,
        "b_hh": jax.random.normal(ks[4], (3 * H,), jnp.float32) * 0.1,
        "w_lin": jax.random.normal(ks[5], (V, H), jnp.float32) * 0.1,
        "b_lin": jax.random.normal(ks[6], (V,), jnp.float32) * 0.1,
    }

    init_hidden = jax.random.normal(ks[7], (1, B, D_INIT), jnp.float32) * 0.2
    att_embedding = jax.random.normal(ks[8], (B, D_ATT), jnp.float32) * 0.2

    # --- free-running (sampling) mode: inputs = [B, 1] START tokens ---
    inputs_fr = jnp.ones((B, 1), jnp.int32)
    hid, lg, sid = decoder_forward(params, inputs_fr, MAX_LEN, init_hidden, att_embedding)
    jax.block_until_ready((hid, lg, sid))
    hid_r, lg_r, sid_r = decoder_forward_ref(params, inputs_fr, MAX_LEN,
                                             init_hidden, att_embedding)
    assert hid.shape == (B, MAX_LEN, H) and lg.shape == (B * MAX_LEN, V)
    assert sid.shape == (B, MAX_LEN)
    assert jnp.allclose(hid, hid_r, atol=2e-3, rtol=2e-3)
    assert jnp.allclose(lg, lg_r, atol=2e-3, rtol=2e-3)
    assert jnp.array_equal(sid, sid_r.astype(jnp.int32))

    # --- teacher-forcing mode: inputs = [B, MAX_LEN + 1] ---
    inputs_tf = jax.random.randint(ks[9], (B, MAX_LEN + 1), 0, V, dtype=jnp.int32)
    hid2, lg2, sid2 = decoder_forward(params, inputs_tf, MAX_LEN, init_hidden, att_embedding)
    jax.block_until_ready((hid2, lg2, sid2))
    hid2_r, lg2_r, sid2_r = decoder_forward_ref(params, inputs_tf, MAX_LEN,
                                                init_hidden, att_embedding)
    assert jnp.allclose(hid2, hid2_r, atol=2e-3, rtol=2e-3)
    assert jnp.allclose(lg2, lg2_r, atol=2e-3, rtol=2e-3)
    assert jnp.array_equal(sid2, sid2_r.astype(jnp.int32))

    # --- bf16-weight variant, teacher forcing only, loose tol; sampled ids not
    #     compared (near-ties may legitimately flip in bf16). ---
    hid3, lg3, sid3 = decoder_forward(params, inputs_tf, MAX_LEN, init_hidden,
                                      att_embedding, weight_dtype=jnp.bfloat16)
    jax.block_until_ready((hid3, lg3, sid3))
    assert jnp.allclose(hid3, hid2_r, atol=5e-2, rtol=5e-2)
    assert jnp.allclose(lg3, lg2_r, atol=5e-2, rtol=5e-2)
    assert sid3.shape == (B, MAX_LEN)

    print("KERNEL_OK")
</pallas_src>

<mosaic_0001>
module attributes {stable_mosaic.version = 11 : i64} {
  func.func @kernel(%arg0: i32, %arg1: memref<8x96xf32, #tpu.memory_space<vmem>>, %arg2: memref<128x96xf32, #tpu.memory_space<vmem>>, %arg3: memref<32x96xf32, #tpu.memory_space<vmem>>, %arg4: memref<1x32xf32, #tpu.memory_space<vmem>>, %arg5: memref<32x128xf32, #tpu.memory_space<vmem>>, %arg6: memref<1x128xf32, #tpu.memory_space<vmem>>, %arg7: memref<8x32xf32, #tpu.memory_space<vmem>>, %arg8: memref<5x8x32xf32, #tpu.memory_space<vmem>>, %arg9: memref<5x8x128xf32, #tpu.memory_space<vmem>>) attributes {dimension_semantics = [#tpu.dimension_semantics<arbitrary>], iteration_bounds = array<i64: 1>, scalar_prefetch = 0 : i64, scratch_operands = 0 : i64, tpu.core_type = #tpu.core_type<tc>, window_params = [{pipeline_mode = #tpu.pipeline_mode<synchronous>, transform_indices = @transform_0, window_bounds = array<i64: 8, 96>}, {pipeline_mode = #tpu.pipeline_mode<synchronous>, transform_indices = @transform_1, window_bounds = array<i64: 128, 96>}, {pipeline_mode = #tpu.pipeline_mode<synchronous>, transform_indices = @transform_2, window_bounds = array<i64: 32, 96>}, {pipeline_mode = #tpu.pipeline_mode<synchronous>, transform_indices = @transform_3, window_bounds = array<i64: 1, 32>}, {pipeline_mode = #tpu.pipeline_mode<synchronous>, transform_indices = @transform_4, window_bounds = array<i64: 32, 128>}, {pipeline_mode = #tpu.pipeline_mode<synchronous>, transform_indices = @transform_5, window_bounds = array<i64: 1, 128>}, {pipeline_mode = #tpu.pipeline_mode<synchronous>, transform_indices = @transform_6, window_bounds = array<i64: 8, 32>}, {pipeline_mode = #tpu.pipeline_mode<synchronous>, transform_indices = @transform_7, window_bounds = array<i64: 5, 8, 32>}, {pipeline_mode = #tpu.pipeline_mode<synchronous>, transform_indices = @transform_8, window_bounds = array<i64: 5, 8, 128>}]} {
    %c0 = arith.constant 0 : index
    %c0_0 = arith.constant 0 : index
    %0 = vector.load %arg3[%c0, %c0_0] : memref<32x96xf32, #tpu.memory_space<vmem>>, vector<32x96xf32>
    %c0_1 = arith.constant 0 : index
    %c0_2 = arith.constant 0 : index
    %1 = vector.load %arg5[%c0_1, %c0_2] : memref<32x128xf32, #tpu.memory_space<vmem>>, vector<32x128xf32>
    %c0_3 = arith.constant 0 : index
    %c0_4 = arith.constant 0 : index
    %2 = vector.load %arg2[%c0_3, %c0_4] : memref<128x96xf32, #tpu.memory_space<vmem>>, vector<128x96xf32>
    %c0_5 = arith.constant 0 : index
    %c0_6 = arith.constant 0 : index
    %3 = vector.load %arg4[%c0_5, %c0_6] : memref<1x32xf32, #tpu.memory_space<vmem>>, vector<1x32xf32>
    %4 = vector.shape_cast %3 : vector<1x32xf32> to vector<1x32xf32>
    %5 = vector.broadcast %4 : vector<1x32xf32> to vector<8x32xf32>
    %c0_7 = arith.constant 0 : index
    %c0_8 = arith.constant 0 : index
    %6 = vector.load %arg6[%c0_7, %c0_8] : memref<1x128xf32, #tpu.memory_space<vmem>>, vector<1x128xf32>
    %7 = vector.shape_cast %6 : vector<1x128xf32> to vector<1x128xf32>
    %8 = vector.broadcast %7 : vector<1x128xf32> to vector<8x128xf32>
    %9 = tpu.iota {dimensions = array<i32: 1>} : vector<8x128xi32>
    %c0_9 = arith.constant 0 : index
    %c0_10 = arith.constant 0 : index
    %10 = vector.load %arg1[%c0_9, %c0_10] : memref<8x96xf32, #tpu.memory_space<vmem>>, vector<8x96xf32>
    %c0_11 = arith.constant 0 : index
    %c0_12 = arith.constant 0 : index
    %11 = vector.load %arg7[%c0_11, %c0_12] : memref<8x32xf32, #tpu.memory_space<vmem>>, vector<8x32xf32>
    %cst = arith.constant dense<0.000000e+00> : vector<8x96xf32>
    %12 = tpu.matmul %11, %0, %cst {dimension_numbers = #tpu.dot_dimension_numbers<[1], [0], [0], [1], [0, 0, 1, 1], [], []>} : vector<8x32xf32>, vector<32x96xf32>, vector<8x96xf32> -> vector<8x96xf32>
    %13 = vector.extract_strided_slice %10 {offsets = [0, 0], sizes = [8, 64], strides = [1, 1]} : vector<8x96xf32> to vector<8x64xf32>
    %14 = vector.extract_strided_slice %12 {offsets = [0, 0], sizes = [8, 64], strides = [1, 1]} : vector<8x96xf32> to vector<8x64xf32>
    %15 = arith.addf %13, %14 : vector<8x64xf32>
    %16 = arith.negf %15 : vector<8x64xf32>
    %17 = math.exp %16 : vector<8x64xf32>
    %cst_13 = arith.constant 1.000000e+00 : f32
    %18 = vector.broadcast %cst_13 : f32 to vector<8x64xf32>
    %19 = arith.addf %18, %17 : vector<8x64xf32>
    %20 = arith.divf %18, %19 : vector<8x64xf32>
    %21 = vector.extract_strided_slice %20 {offsets = [0, 0], sizes = [8, 32], strides = [1, 1]} : vector<8x64xf32> to vector<8x32xf32>
    %22 = vector.extract_strided_slice %20 {offsets = [0, 32], sizes = [8, 32], strides = [1, 1]} : vector<8x64xf32> to vector<8x32xf32>
    %23 = vector.extract_strided_slice %10 {offsets = [0, 64], sizes = [8, 32], strides = [1, 1]} : vector<8x96xf32> to vector<8x32xf32>
    %24 = vector.extract_strided_slice %12 {offsets = [0, 64], sizes = [8, 32], strides = [1, 1]} : vector<8x96xf32> to vector<8x32xf32>
    %25 = arith.addf %24, %5 : vector<8x32xf32>
    %26 = arith.mulf %21, %25 : vector<8x32xf32>
    %27 = arith.addf %23, %26 : vector<8x32xf32>
    %28 = math.tanh %27 : vector<8x32xf32>
    %cst_14 = arith.constant 1.000000e+00 : f32
    %29 = vector.broadcast %cst_14 : f32 to vector<8x32xf32>
    %30 = arith.subf %29, %22 : vector<8x32xf32>
    %31 = arith.mulf %30, %28 : vector<8x32xf32>
    %32 = arith.mulf %22, %11 : vector<8x32xf32>
    %33 = arith.addf %31, %32 : vector<8x32xf32>
    %cst_15 = arith.constant dense<0.000000e+00> : vector<8x128xf32>
    %34 = tpu.matmul %33, %1, %cst_15 {dimension_numbers = #tpu.dot_dimension_numbers<[1], [0], [0], [1], [0, 0, 1, 1], [], []>} : vector<8x32xf32>, vector<32x128xf32>, vector<8x128xf32> -> vector<8x128xf32>
    %35 = arith.addf %34, %8 : vector<8x128xf32>
    %cst_16 = arith.constant dense<0xFF800000> : vector<8xf32>
    %36 = vector.multi_reduction <maximumf>, %35, %cst_16 [1] : vector<8x128xf32> to vector<8xf32>
    %37 = vector.shape_cast %36 : vector<8xf32> to vector<8x1xf32>
    %38 = vector.broadcast %37 : vector<8x1xf32> to vector<8x128xf32>
    %39 = arith.cmpf oeq, %35, %38 : vector<8x128xf32>
    %c128_i32 = arith.constant 128 : i32
    %40 = vector.broadcast %c128_i32 : i32 to vector<8x128xi32>
    %41 = arith.select %39, %9, %40 : vector<8x128xi1>, vector<8x128xi32>
    %cst_17 = arith.constant dense<2147483647> : vector<8xi32>
    %42 = vector.multi_reduction <minsi>, %41, %cst_17 [1] : vector<8x128xi32> to vector<8xi32>
    %43 = vector.shape_cast %33 : vector<8x32xf32> to vector<1x8x32xf32>
    %c0_18 = arith.constant 0 : index
    %c0_19 = arith.constant 0 : index
    %c0_20 = arith.constant 0 : index
    %44 = vector.load %arg8[%c0_18, %c0_19, %c0_20] : memref<5x8x32xf32, #tpu.memory_space<vmem>>, vector<1x8x32xf32>
    tpu.vector_store %arg8[%c0_18, %c0_19, %c0_20], %43 {strides = array<i32>} : memref<5x8x32xf32, #tpu.memory_space<vmem>>, vector<1x8x32xf32>,
    %45 = vector.shape_cast %35 : vector<8x128xf32> to vector<1x8x128xf32>
    %c0_21 = arith.constant 0 : index
    %c0_22 = arith.constant 0 : index
    %c0_23 = arith.constant 0 : index
    %46 = vector.load %arg9[%c0_21, %c0_22, %c0_23] : memref<5x8x128xf32, #tpu.memory_space<vmem>>, vector<1x8x128xf32>
    tpu.vector_store %arg9[%c0_21, %c0_22, %c0_23], %45 {strides = array<i32>} : memref<5x8x128xf32, #tpu.memory_space<vmem>>, vector<1x8x128xf32>,
    %c1_i32 = arith.constant 1 : i32
    %47 = vector.shape_cast %42 : vector<8xi32> to vector<8x1xi32>
    %48 = vector.broadcast %47 : vector<8x1xi32> to vector<8x128xi32>
    %49 = arith.cmpi eq, %9, %48 : vector<8x128xi32>
    %50 = arith.extui %49 : vector<8x128xi1> to vector<8x128xi32>
    %51 = arith.sitofp %50 : vector<8x128xi32> to vector<8x128xf32>
    %cst_24 = arith.constant dense<0.000000e+00> : vector<8x96xf32>
    %52 = tpu.matmul %51, %2, %cst_24 {dimension_numbers = #tpu.dot_dimension_numbers<[1], [0], [0], [1], [0, 0, 1, 1], [], []>} : vector<8x128xf32>, vector<128x96xf32>, vector<8x96xf32> -> vector<8x96xf32>
    %cst_25 = arith.constant dense<0.000000e+00> : vector<8x96xf32>
    %53 = tpu.matmul %33, %0, %cst_25 {dimension_numbers = #tpu.dot_dimension_numbers<[1], [0], [0], [1], [0, 0, 1, 1], [], []>} : vector<8x32xf32>, vector<32x96xf32>, vector<8x96xf32> -> vector<8x96xf32>
    %54 = vector.extract_strided_slice %52 {offsets = [0, 0], sizes = [8, 64], strides = [1, 1]} : vector<8x96xf32> to vector<8x64xf32>
    %55 = vector.extract_strided_slice %53 {offsets = [0, 0], sizes = [8, 64], strides = [1, 1]} : vector<8x96xf32> to vector<8x64xf32>
    %56 = arith.addf %54, %55 : vector<8x64xf32>
    %57 = arith.negf %56 : vector<8x64xf32>
    %58 = math.exp %57 : vector<8x64xf32>
    %cst_26 = arith.constant 1.000000e+00 : f32
    %59 = vector.broadcast %cst_26 : f32 to vector<8x64xf32>
    %60 = arith.addf %59, %58 : vector<8x64xf32>
    %61 = arith.divf %59, %60 : vector<8x64xf32>
    %62 = vector.extract_strided_slice %61 {offsets = [0, 0], sizes = [8, 32], strides = [1, 1]} : vector<8x64xf32> to vector<8x32xf32>
    %63 = vector.extract_strided_slice %61 {offsets = [0, 32], sizes = [8, 32], strides = [1, 1]} : vector<8x64xf32> to vector<8x32xf32>
    %64 = vector.extract_strided_slice %52 {offsets = [0, 64], sizes = [8, 32], strides = [1, 1]} : vector<8x96xf32> to vector<8x32xf32>
    %65 = vector.extract_strided_slice %53 {offsets = [0, 64], sizes = [8, 32], strides = [1, 1]} : vector<8x96xf32> to vector<8x32xf32>
    %66 = arith.addf %65, %5 : vector<8x32xf32>
    %67 = arith.mulf %62, %66 : vector<8x32xf32>
    %68 = arith.addf %64, %67 : vector<8x32xf32>
    %69 = math.tanh %68 : vector<8x32xf32>
    %cst_27 = arith.constant 1.000000e+00 : f32
    %70 = vector.broadcast %cst_27 : f32 to vector<8x32xf32>
    %71 = arith.subf %70, %63 : vector<8x32xf32>
    %72 = arith.mulf %71, %69 : vector<8x32xf32>
    %73 = arith.mulf %63, %33 : vector<8x32xf32>
    %74 = arith.addf %72, %73 : vector<8x32xf32>
    %cst_28 = arith.constant dense<0.000000e+00> : vector<8x128xf32>
    %75 = tpu.matmul %74, %1, %cst_28 {dimension_numbers = #tpu.dot_dimension_numbers<[1], [0], [0], [1], [0, 0, 1, 1], [], []>} : vector<8x32xf32>, vector<32x128xf32>, vector<8x128xf32> -> vector<8x128xf32>
    %76 = arith.addf %75, %8 : vector<8x128xf32>
    %cst_29 = arith.constant dense<0xFF800000> : vector<8xf32>
    %77 = vector.multi_reduction <maximumf>, %76, %cst_29 [1] : vector<8x128xf32> to vector<8xf32>
    %78 = vector.shape_cast %77 : vector<8xf32> to vector<8x1xf32>
    %79 = vector.broadcast %78 : vector<8x1xf32> to vector<8x128xf32>
    %80 = arith.cmpf oeq, %76, %79 : vector<8x128xf32>
    %c128_i32_30 = arith.constant 128 : i32
    %81 = vector.broadcast %c128_i32_30 : i32 to vector<8x128xi32>
    %82 = arith.select %80, %9, %81 : vector<8x128xi1>, vector<8x128xi32>
    %cst_31 = arith.constant dense<2147483647> : vector<8xi32>
    %83 = vector.multi_reduction <minsi>, %82, %cst_31 [1] : vector<8x128xi32> to vector<8xi32>
    %84 = vector.shape_cast %74 : vector<8x32xf32> to vector<1x8x32xf32>
    %85 = arith.index_cast %c1_i32 : i32 to index
    %c0_32 = arith.constant 0 : index
    %c0_33 = arith.constant 0 : index
    %86 = vector.load %arg8[%85, %c0_32, %c0_33] : memref<5x8x32xf32, #tpu.memory_space<vmem>>, vector<1x8x32xf32>
    tpu.vector_store %arg8[%85, %c0_32, %c0_33], %84 {strides = array<i32>} : memref<5x8x32xf32, #tpu.memory_space<vmem>>, vector<1x8x32xf32>,
    %87 = vector.shape_cast %76 : vector<8x128xf32> to vector<1x8x128xf32>
    %88 = arith.index_cast %c1_i32 : i32 to index
    %c0_34 = arith.constant 0 : index
    %c0_35 = arith.constant 0 : index
    %89 = vector.load %arg9[%88, %c0_34, %c0_35] : memref<5x8x128xf32, #tpu.memory_space<vmem>>, vector<1x8x128xf32>
    tpu.vector_store %arg9[%88, %c0_34, %c0_35], %87 {strides = array<i32>} : memref<5x8x128xf32, #tpu.memory_space<vmem>>, vector<1x8x128xf32>,
    %c2_i32 = arith.constant 2 : i32
    %90 = vector.shape_cast %83 : vector<8xi32> to vector<8x1xi32>
    %91 = vector.broadcast %90 : vector<8x1xi32> to vector<8x128xi32>
    %92 = arith.cmpi eq, %9, %91 : vector<8x128xi32>
    %93 = arith.extui %92 : vector<8x128xi1> to vector<8x128xi32>
    %94 = arith.sitofp %93 : vector<8x128xi32> to vector<8x128xf32>
    %cst_36 = arith.constant dense<0.000000e+00> : vector<8x96xf32>
    %95 = tpu.matmul %94, %2, %cst_36 {dimension_numbers = #tpu.dot_dimension_numbers<[1], [0], [0], [1], [0, 0, 1, 1], [], []>} : vector<8x128xf32>, vector<128x96xf32>, vector<8x96xf32> -> vector<8x96xf32>
    %cst_37 = arith.constant dense<0.000000e+00> : vector<8x96xf32>
    %96 = tpu.matmul %74, %0, %cst_37 {dimension_numbers = #tpu.dot_dimension_numbers<[1], [0], [0], [1], [0, 0, 1, 1], [], []>} : vector<8x32xf32>, vector<32x96xf32>, vector<8x96xf32> -> vector<8x96xf32>
    %97 = vector.extract_strided_slice %95 {offsets = [0, 0], sizes = [8, 64], strides = [1, 1]} : vector<8x96xf32> to vector<8x64xf32>
    %98 = vector.extract_strided_slice %96 {offsets = [0, 0], sizes = [8, 64], strides = [1, 1]} : vector<8x96xf32> to vector<8x64xf32>
    %99 = arith.addf %97, %98 : vector<8x64xf32>
    %100 = arith.negf %99 : vector<8x64xf32>
    %101 = math.exp %100 : vector<8x64xf32>
    %cst_38 = arith.constant 1.000000e+00 : f32
    %102 = vector.broadcast %cst_38 : f32 to vector<8x64xf32>
    %103 = arith.addf %102, %101 : vector<8x64xf32>
    %104 = arith.divf %102, %103 : vector<8x64xf32>
    %105 = vector.extract_strided_slice %104 {offsets = [0, 0], sizes = [8, 32], strides = [1, 1]} : vector<8x64xf32> to vector<8x32xf32>
    %106 = vector.extract_strided_slice %104 {offsets = [0, 32], sizes = [8, 32], strides = [1, 1]} : vector<8x64xf32> to vector<8x32xf32>
    %107 = vector.extract_strided_slice %95 {offsets = [0, 64], sizes = [8, 32], strides = [1, 1]} : vector<8x96xf32> to vector<8x32xf32>
    %108 = vector.extract_strided_slice %96 {offsets = [0, 64], sizes = [8, 32], strides = [1, 1]} : vector<8x96xf32> to vector<8x32xf32>
    %109 = arith.addf %108, %5 : vector<8x32xf32>
    %110 = arith.mulf %105, %109 : vector<8x32xf32>
    %111 = arith.addf %107, %110 : vector<8x32xf32>
    %112 = math.tanh %111 : vector<8x32xf32>
    %cst_39 = arith.constant 1.000000e+00 : f32
    %113 = vector.broadcast %cst_39 : f32 to vector<8x32xf32>
    %114 = arith.subf %113, %106 : vector<8x32xf32>
    %115 = arith.mulf %114, %112 : vector<8x32xf32>
    %116 = arith.mulf %106, %74 : vector<8x32xf32>
    %117 = arith.addf %115, %116 : vector<8x32xf32>
    %cst_40 = arith.constant dense<0.000000e+00> : vector<8x128xf32>
    %118 = tpu.matmul %117, %1, %cst_40 {dimension_numbers = #tpu.dot_dimension_numbers<[1], [0], [0], [1], [0, 0, 1, 1], [], []>} : vector<8x32xf32>, vector<32x128xf32>, vector<8x128xf32> -> vector<8x128xf32>
    %119 = arith.addf %118, %8 : vector<8x128xf32>
    %cst_41 = arith.constant dense<0xFF800000> : vector<8xf32>
    %120 = vector.multi_reduction <maximumf>, %119, %cst_41 [1] : vector<8x128xf32> to vector<8xf32>
    %121 = vector.shape_cast %120 : vector<8xf32> to vector<8x1xf32>
    %122 = vector.broadcast %121 : vector<8x1xf32> to vector<8x128xf32>
    %123 = arith.cmpf oeq, %119, %122 : vector<8x128xf32>
    %c128_i32_42 = arith.constant 128 : i32
    %124 = vector.broadcast %c128_i32_42 : i32 to vector<8x128xi32>
    %125 = arith.select %123, %9, %124 : vector<8x128xi1>, vector<8x128xi32>
    %cst_43 = arith.constant dense<2147483647> : vector<8xi32>
    %126 = vector.multi_reduction <minsi>, %125, %cst_43 [1] : vector<8x128xi32> to vector<8xi32>
    %127 = vector.shape_cast %117 : vector<8x32xf32> to vector<1x8x32xf32>
    %128 = arith.index_cast %c2_i32 : i32 to index
    %c0_44 = arith.constant 0 : index
    %c0_45 = arith.constant 0 : index
    %129 = vector.load %arg8[%128, %c0_44, %c0_45] : memref<5x8x32xf32, #tpu.memory_space<vmem>>, vector<1x8x32xf32>
    tpu.vector_store %arg8[%128, %c0_44, %c0_45], %127 {strides = array<i32>} : memref<5x8x32xf32, #tpu.memory_space<vmem>>, vector<1x8x32xf32>,
    %130 = vector.shape_cast %119 : vector<8x128xf32> to vector<1x8x128xf32>
    %131 = arith.index_cast %c2_i32 : i32 to index
    %c0_46 = arith.constant 0 : index
    %c0_47 = arith.constant 0 : index
    %132 = vector.load %arg9[%131, %c0_46, %c0_47] : memref<5x8x128xf32, #tpu.memory_space<vmem>>, vector<1x8x128xf32>
    tpu.vector_store %arg9[%131, %c0_46, %c0_47], %130 {strides = array<i32>} : memref<5x8x128xf32, #tpu.memory_space<vmem>>, vector<1x8x128xf32>,
    %c3_i32 = arith.constant 3 : i32
    %133 = vector.shape_cast %126 : vector<8xi32> to vector<8x1xi32>
    %134 = vector.broadcast %133 : vector<8x1xi32> to vector<8x128xi32>
    %135 = arith.cmpi eq, %9, %134 : vector<8x128xi32>
    %136 = arith.extui %135 : vector<8x128xi1> to vector<8x128xi32>
    %137 = arith.sitofp %136 : vector<8x128xi32> to vector<8x128xf32>
    %cst_48 = arith.constant dense<0.000000e+00> : vector<8x96xf32>
    %138 = tpu.matmul %137, %2, %cst_48 {dimension_numbers = #tpu.dot_dimension_numbers<[1], [0], [0], [1], [0, 0, 1, 1], [], []>} : vector<8x128xf32>, vector<128x96xf32>, vector<8x96xf32> -> vector<8x96xf32>
    %cst_49 = arith.constant dense<0.000000e+00> : vector<8x96xf32>
    %139 = tpu.matmul %117, %0, %cst_49 {dimension_numbers = #tpu.dot_dimension_numbers<[1], [0], [0], [1], [0, 0, 1, 1], [], []>} : vector<8x32xf32>, vector<32x96xf32>, vector<8x96xf32> -> vector<8x96xf32>
    %140 = vector.extract_strided_slice %138 {offsets = [0, 0], sizes = [8, 64], strides = [1, 1]} : vector<8x96xf32> to vector<8x64xf32>
    %141 = vector.extract_strided_slice %139 {offsets = [0, 0], sizes = [8, 64], strides = [1, 1]} : vector<8x96xf32> to vector<8x64xf32>
    %142 = arith.addf %140, %141 : vector<8x64xf32>
    %143 = arith.negf %142 : vector<8x64xf32>
    %144 = math.exp %143 : vector<8x64xf32>
    %cst_50 = arith.constant 1.000000e+00 : f32
    %145 = vector.broadcast %cst_50 : f32 to vector<8x64xf32>
    %146 = arith.addf %145, %144 : vector<8x64xf32>
    %147 = arith.divf %145, %146 : vector<8x64xf32>
    %148 = vector.extract_strided_slice %147 {offsets = [0, 0], sizes = [8, 32], strides = [1, 1]} : vector<8x64xf32> to vector<8x32xf32>
    %149 = vector.extract_strided_slice %147 {offsets = [0, 32], sizes = [8, 32], strides = [1, 1]} : vector<8x64xf32> to vector<8x32xf32>
    %150 = vector.extract_strided_slice %138 {offsets = [0, 64], sizes = [8, 32], strides = [1, 1]} : vector<8x96xf32> to vector<8x32xf32>
    %151 = vector.extract_strided_slice %139 {offsets = [0, 64], sizes = [8, 32], strides = [1, 1]} : vector<8x96xf32> to vector<8x32xf32>
    %152 = arith.addf %151, %5 : vector<8x32xf32>
    %153 = arith.mulf %148, %152 : vector<8x32xf32>
    %154 = arith.addf %150, %153 : vector<8x32xf32>
    %155 = math.tanh %154 : vector<8x32xf32>
    %cst_51 = arith.constant 1.000000e+00 : f32
    %156 = vector.broadcast %cst_51 : f32 to vector<8x32xf32>
    %157 = arith.subf %156, %149 : vector<8x32xf32>
    %158 = arith.mulf %157, %155 : vector<8x32xf32>
    %159 = arith.mulf %149, %117 : vector<8x32xf32>
    %160 = arith.addf %158, %159 : vector<8x32xf32>
    %cst_52 = arith.constant dense<0.000000e+00> : vector<8x128xf32>
    %161 = tpu.matmul %160, %1, %cst_52 {dimension_numbers = #tpu.dot_dimension_numbers<[1], [0], [0], [1], [0, 0, 1, 1], [], []>} : vector<8x32xf32>, vector<32x128xf32>, vector<8x128xf32> -> vector<8x128xf32>
    %162 = arith.addf %161, %8 : vector<8x128xf32>
    %cst_53 = arith.constant dense<0xFF800000> : vector<8xf32>
    %163 = vector.multi_reduction <maximumf>, %162, %cst_53 [1] : vector<8x128xf32> to vector<8xf32>
    %164 = vector.shape_cast %163 : vector<8xf32> to vector<8x1xf32>
    %165 = vector.broadcast %164 : vector<8x1xf32> to vector<8x128xf32>
    %166 = arith.cmpf oeq, %162, %165 : vector<8x128xf32>
    %c128_i32_54 = arith.constant 128 : i32
    %167 = vector.broadcast %c128_i32_54 : i32 to vector<8x128xi32>
    %168 = arith.select %166, %9, %167 : vector<8x128xi1>, vector<8x128xi32>
    %cst_55 = arith.constant dense<2147483647> : vector<8xi32>
    %169 = vector.multi_reduction <minsi>, %168, %cst_55 [1] : vector<8x128xi32> to vector<8xi32>
    %170 = vector.shape_cast %160 : vector<8x32xf32> to vector<1x8x32xf32>
    %171 = arith.index_cast %c3_i32 : i32 to index
    %c0_56 = arith.constant 0 : index
    %c0_57 = arith.constant 0 : index
    %172 = vector.load %arg8[%171, %c0_56, %c0_57] : memref<5x8x32xf32, #tpu.memory_space<vmem>>, vector<1x8x32xf32>
    tpu.vector_store %arg8[%171, %c0_56, %c0_57], %170 {strides = array<i32>} : memref<5x8x32xf32, #tpu.memory_space<vmem>>, vector<1x8x32xf32>,
    %173 = vector.shape_cast %162 : vector<8x128xf32> to vector<1x8x128xf32>
    %174 = arith.index_cast %c3_i32 : i32 to index
    %c0_58 = arith.constant 0 : index
    %c0_59 = arith.constant 0 : index
    %175 = vector.load %arg9[%174, %c0_58, %c0_59] : memref<5x8x128xf32, #tpu.memory_space<vmem>>, vector<1x8x128xf32>
    tpu.vector_store %arg9[%174, %c0_58, %c0_59], %173 {strides = array<i32>} : memref<5x8x128xf32, #tpu.memory_space<vmem>>, vector<1x8x128xf32>,
    %c4_i32 = arith.constant 4 : i32
    %176 = vector.shape_cast %169 : vector<8xi32> to vector<8x1xi32>
    %177 = vector.broadcast %176 : vector<8x1xi32> to vector<8x128xi32>
    %178 = arith.cmpi eq, %9, %177 : vector<8x128xi32>
    %179 = arith.extui %178 : vector<8x128xi1> to vector<8x128xi32>
    %180 = arith.sitofp %179 : vector<8x128xi32> to vector<8x128xf32>
    %cst_60 = arith.constant dense<0.000000e+00> : vector<8x96xf32>
    %181 = tpu.matmul %180, %2, %cst_60 {dimension_numbers = #tpu.dot_dimension_numbers<[1], [0], [0], [1], [0, 0, 1, 1], [], []>} : vector<8x128xf32>, vector<128x96xf32>, vector<8x96xf32> -> vector<8x96xf32>
    %cst_61 = arith.constant dense<0.000000e+00> : vector<8x96xf32>
    %182 = tpu.matmul %160, %0, %cst_61 {dimension_numbers = #tpu.dot_dimension_numbers<[1], [0], [0], [1], [0, 0, 1, 1], [], []>} : vector<8x32xf32>, vector<32x96xf32>, vector<8x96xf32> -> vector<8x96xf32>
    %183 = vector.extract_strided_slice %181 {offsets = [0, 0], sizes = [8, 64], strides = [1, 1]} : vector<8x96xf32> to vector<8x64xf32>
    %184 = vector.extract_strided_slice %182 {offsets = [0, 0], sizes = [8, 64], strides = [1, 1]} : vector<8x96xf32> to vector<8x64xf32>
    %185 = arith.addf %183, %184 : vector<8x64xf32>
    %186 = arith.negf %185 : vector<8x64xf32>
    %187 = math.exp %186 : vector<8x64xf32>
    %cst_62 = arith.constant 1.000000e+00 : f32
    %188 = vector.broadcast %cst_62 : f32 to vector<8x64xf32>
    %189 = arith.addf %188, %187 : vector<8x64xf32>
    %190 = arith.divf %188, %189 : vector<8x64xf32>
    %191 = vector.extract_strided_slice %190 {offsets = [0, 0], sizes = [8, 32], strides = [1, 1]} : vector<8x64xf32> to vector<8x32xf32>
    %192 = vector.extract_strided_slice %190 {offsets = [0, 32], sizes = [8, 32], strides = [1, 1]} : vector<8x64xf32> to vector<8x32xf32>
    %193 = vector.extract_strided_slice %181 {offsets = [0, 64], sizes = [8, 32], strides = [1, 1]} : vector<8x96xf32> to vector<8x32xf32>
    %194 = vector.extract_strided_slice %182 {offsets = [0, 64], sizes = [8, 32], strides = [1, 1]} : vector<8x96xf32> to vector<8x32xf32>
    %195 = arith.addf %194, %5 : vector<8x32xf32>
    %196 = arith.mulf %191, %195 : vector<8x32xf32>
    %197 = arith.addf %193, %196 : vector<8x32xf32>
    %198 = math.tanh %197 : vector<8x32xf32>
    %cst_63 = arith.constant 1.000000e+00 : f32
    %199 = vector.broadcast %cst_63 : f32 to vector<8x32xf32>
    %200 = arith.subf %199, %192 : vector<8x32xf32>
    %201 = arith.mulf %200, %198 : vector<8x32xf32>
    %202 = arith.mulf %192, %160 : vector<8x32xf32>
    %203 = arith.addf %201, %202 : vector<8x32xf32>
    %cst_64 = arith.constant dense<0.000000e+00> : vector<8x128xf32>
    %204 = tpu.matmul %203, %1, %cst_64 {dimension_numbers = #tpu.dot_dimension_numbers<[1], [0], [0], [1], [0, 0, 1, 1], [], []>} : vector<8x32xf32>, vector<32x128xf32>, vector<8x128xf32> -> vector<8x128xf32>
    %205 = arith.addf %204, %8 : vector<8x128xf32>
    %cst_65 = arith.constant dense<0xFF800000> : vector<8xf32>
    %206 = vector.multi_reduction <maximumf>, %205, %cst_65 [1] : vector<8x128xf32> to vector<8xf32>
    %207 = vector.shape_cast %206 : vector<8xf32> to vector<8x1xf32>
    %208 = vector.broadcast %207 : vector<8x1xf32> to vector<8x128xf32>
    %209 = arith.cmpf oeq, %205, %208 : vector<8x128xf32>
    %c128_i32_66 = arith.constant 128 : i32
    %210 = vector.broadcast %c128_i32_66 : i32 to vector<8x128xi32>
    %211 = arith.select %209, %9, %210 : vector<8x128xi1>, vector<8x128xi32>
    %cst_67 = arith.constant dense<2147483647> : vector<8xi32>
    %212 = vector.multi_reduction <minsi>, %211, %cst_67 [1] : vector<8x128xi32> to vector<8xi32>
    %213 = vector.shape_cast %203 : vector<8x32xf32> to vector<1x8x32xf32>
    %214 = arith.index_cast %c4_i32 : i32 to index
    %c0_68 = arith.constant 0 : index
    %c0_69 = arith.constant 0 : index
    %215 = vector.load %arg8[%214, %c0_68, %c0_69] : memref<5x8x32xf32, #tpu.memory_space<vmem>>, vector<1x8x32xf32>
    tpu.vector_store %arg8[%214, %c0_68, %c0_69], %213 {strides = array<i32>} : memref<5x8x32xf32, #tpu.memory_space<vmem>>, vector<1x8x32xf32>,
    %216 = vector.shape_cast %205 : vector<8x128xf32> to vector<1x8x128xf32>
    %217 = arith.index_cast %c4_i32 : i32 to index
    %c0_70 = arith.constant 0 : index
    %c0_71 = arith.constant 0 : index
    %218 = vector.load %arg9[%217, %c0_70, %c0_71] : memref<5x8x128xf32, #tpu.memory_space<vmem>>, vector<1x8x128xf32>
    tpu.vector_store %arg9[%217, %c0_70, %c0_71], %216 {strides = array<i32>} : memref<5x8x128xf32, #tpu.memory_space<vmem>>, vector<1x8x128xf32>,
    %c4_i32_72 = arith.constant 4 : i32
    return
  }
  func.func @transform_0(%arg0: i32) -> (i32, i32) {
    %c0_i32 = arith.constant 0 : i32
    %c0_i32_0 = arith.constant 0 : i32
    %c0_i32_1 = arith.constant 0 : i32
    return %c0_i32, %c0_i32_0 : i32, i32
  }
  func.func @transform_1(%arg0: i32) -> (i32, i32) {
    %c0_i32 = arith.constant 0 : i32
    %c0_i32_0 = arith.constant 0 : i32
    %c0_i32_1 = arith.constant 0 : i32
    return %c0_i32, %c0_i32_0 : i32, i32
  }
  func.func @transform_2(%arg0: i32) -> (i32, i32) {
    %c0_i32 = arith.constant 0 : i32
    %c0_i32_0 = arith.constant 0 : i32
    %c0_i32_1 = arith.constant 0 : i32
    return %c0_i32, %c0_i32_0 : i32, i32
  }
  func.func @transform_3(%arg0: i32) -> (i32, i32) {
    %c0_i32 = arith.constant 0 : i32
    %c0_i32_0 = arith.constant 0 : i32
    %c0_i32_1 = arith.constant 0 : i32
    return %c0_i32, %c0_i32_0 : i32, i32
  }
  func.func @transform_4(%arg0: i32) -> (i32, i32) {
    %c0_i32 = arith.constant 0 : i32
    %c0_i32_0 = arith.constant 0 : i32
    %c0_i32_1 = arith.constant 0 : i32
    return %c0_i32, %c0_i32_0 : i32, i32
  }
  func.func @transform_5(%arg0: i32) -> (i32, i32) {
    %c0_i32 = arith.constant 0 : i32
    %c0_i32_0 = arith.constant 0 : i32
    %c0_i32_1 = arith.constant 0 : i32
    return %c0_i32, %c0_i32_0 : i32, i32
  }
  func.func @transform_6(%arg0: i32) -> (i32, i32) {
    %c0_i32 = arith.constant 0 : i32
    %c0_i32_0 = arith.constant 0 : i32
    %c0_i32_1 = arith.constant 0 : i32
    return %c0_i32, %c0_i32_0 : i32, i32
  }
  func.func @transform_7(%arg0: i32) -> (i32, i32, i32) {
    %c0_i32 = arith.constant 0 : i32
    %c0_i32_0 = arith.constant 0 : i32
    %c0_i32_1 = arith.constant 0 : i32
    %c0_i32_2 = arith.constant 0 : i32
    return %c0_i32, %c0_i32_0, %c0_i32_1 : i32, i32, i32
  }
  func.func @transform_8(%arg0: i32) -> (i32, i32, i32) {
    %c0_i32 = arith.constant 0 : i32
    %c0_i32_0 = arith.constant 0 : i32
    %c0_i32_1 = arith.constant 0 : i32
    %c0_i32_2 = arith.constant 0 : i32
    return %c0_i32, %c0_i32_0, %c0_i32_1 : i32, i32, i32
  }
}

</mosaic_0001>

<llo_original>
// kernel: tpu_custom_call.1
$region0: #{tpu_custom_call.1}
  #allocation0 [shape = 'u32[]', space=smem, size = 0x4, offset = 0x4, fixed_abs, tag = 'smem constant byte address 0x4 - core index']
  #allocation1 [shape = 'u32[72,128]{1,0:T(1,128)}', space=vmem, size = 0x9000, scoped, tag = 'internal scratch']
  %s0 = inlined_call_operand.vmem [shape: f32[8,96], index: 0, kind: input, shape index: {}]
  %s1 = inlined_call_operand.vmem [shape: f32[128,96], index: 1, kind: input, shape index: {}]
  %s2 = inlined_call_operand.vmem [shape: f32[32,96], index: 2, kind: input, shape index: {}]
  %s3 = inlined_call_operand.vmem [shape: f32[1,32], index: 3, kind: input, shape index: {}]
  %s4 = inlined_call_operand.vmem [shape: f32[32,128], index: 4, kind: input, shape index: {}]
  %s5 = inlined_call_operand.vmem [shape: f32[1,128], index: 5, kind: input, shape index: {}]
  %s6 = inlined_call_operand.vmem [shape: f32[8,32], index: 6, kind: input, shape index: {}]
  %s7 = inlined_call_operand.hbm [shape: f32[5,8,32], index: 7, kind: output, shape index: {0}]
  %s8 = inlined_call_operand.hbm [shape: f32[5,8,128], index: 8, kind: output, shape index: {1}]
  %9 = xla_tuple %s7, %s8
  %s10 = sld [smem:[#allocation0]]
  $region46: #{tpu_custom_call.1} parent=0
    _
  %s12 = ssub.s32 1, %s10
  %s13 = scalar_select 0, %s12, %s10
  $region1: #{tpu_custom_call.1} parent=0
    #allocation2 [shape = 'u8[20480]{0}', space=vmem, size = 0x5000, scoped, tag = 'output window, operand 0, single buffered']
    #allocation3 [shape = 's32[1]{0}', space=sflag, size = 0x4, scoped, tag = 'scoped memory for tpu_custom_call.1']
    #allocation4 [shape = 'u8[20480]{0}', space=vmem, size = 0x5000, scoped, tag = 'output window, operand 1, single buffered']
    #allocation5 [shape = 's32[1]{0}', space=sflag, size = 0x4, scoped, tag = 'scoped memory for tpu_custom_call.1']
    %14 = vsyncpa [#allocation3], 0
    %15 = vsyncpa [#allocation5], 0
    // Predicated region
    $region2: #{tpu_custom_call.1} parent=1 // pred_check
      _
    $region3: #{tpu_custom_call.1} parent=1 // pred_check_branch
      %17 = sbr.rel (0) target = $region5
    $region4: #{tpu_custom_call.1} parent=1 // pred_region
      _
    $region5: #{tpu_custom_call.1} parent=1 // pred_fallthru
      _
    // Predicated region
    $region6: #{tpu_custom_call.1} parent=1 // pred_check
      _
    $region7: #{tpu_custom_call.1} parent=1 // pred_check_branch
      %19 = sbr.rel (0) target = $region9
    $region8: #{tpu_custom_call.1} parent=1 // pred_region
      _
    $region9: #{tpu_custom_call.1} parent=1 // pred_fallthru
      _
    // Predicated region
    $region10: #{tpu_custom_call.1} parent=1 // pred_check
      _
    $region11: #{tpu_custom_call.1} parent=1 // pred_check_branch
      %21 = sbr.rel (0) target = $region13
    $region12: #{tpu_custom_call.1} parent=1 // pred_region
      _
    $region13: #{tpu_custom_call.1} parent=1 // pred_fallthru
      _
    // Predicated region
    $region14: #{tpu_custom_call.1} parent=1 // pred_check
      _
    $region15: #{tpu_custom_call.1} parent=1 // pred_check_branch
      %23 = sbr.rel (0) target = $region17
    $region16: #{tpu_custom_call.1} parent=1 // pred_region
      _
    $region17: #{tpu_custom_call.1} parent=1 // pred_fallthru
      _
    // Predicated region
    $region18: #{tpu_custom_call.1} parent=1 // pred_check
      _
    $region19: #{tpu_custom_call.1} parent=1 // pred_check_branch
      %25 = sbr.rel (0) target = $region21
    $region20: #{tpu_custom_call.1} parent=1 // pred_region
      _
    $region21: #{tpu_custom_call.1} parent=1 // pred_fallthru
      _
    // Predicated region
    $region22: #{tpu_custom_call.1} parent=1 // pred_check
      _
    $region23: #{tpu_custom_call.1} parent=1 // pred_check_branch
      %27 = sbr.rel (0) target = $region25
    $region24: #{tpu_custom_call.1} parent=1 // pred_region
      _
    $region25: #{tpu_custom_call.1} parent=1 // pred_fallthru
      _
    // Predicated region
    $region26: #{tpu_custom_call.1} parent=1 // pred_check
      _
    $region27: #{tpu_custom_call.1} parent=1 // pred_check_branch
      %29 = sbr.rel (0) target = $region29
    $region28: #{tpu_custom_call.1} parent=1 // pred_region
      _
    $region29: #{tpu_custom_call.1} parent=1 // pred_fallthru
      _
    %v30 = vld [vmem:[%s2] sm:$0xff]
    %v31 = vld [vmem:[%s2 + $0x8] sm:$0xff]
    %v32 = vld [vmem:[%s2 + $0x10] sm:$0xff]
    %v33 = vld [vmem:[%s2 + $0x18] sm:$0xff]
    %v34 = vld [vmem:[%s4] sm:$0xff]
    %v35 = vld [vmem:[%s4 + $0x8] sm:$0xff]
    %v36 = vld [vmem:[%s4 + $0x10] sm:$0xff]
    %v37 = vld [vmem:[%s4 + $0x18] sm:$0xff]
    %v38 = vld [vmem:[%s1] sm:$0xff]
    %v39 = vld [vmem:[%s1 + $0x8] sm:$0xff]
    %v40 = vld [vmem:[%s1 + $0x10] sm:$0xff]
    %v41 = vld [vmem:[%s1 + $0x18] sm:$0xff]
    %v42 = vld [vmem:[%s1 + $0x20] sm:$0xff]
    %v43 = vld [vmem:[%s1 + $0x28] sm:$0xff]
    %v44 = vld [vmem:[%s1 + $0x30] sm:$0xff]
    %v45 = vld [vmem:[%s1 + $0x38] sm:$0xff]
    %v46 = vld [vmem:[%s1 + $0x40] sm:$0xff]
    %v47 = vld [vmem:[%s1 + $0x48] sm:$0xff]
    %v48 = vld [vmem:[%s1 + $0x50] sm:$0xff]
    %v49 = vld [vmem:[%s1 + $0x58] sm:$0xff]
    %v50 = vld [vmem:[%s1 + $0x60] sm:$0xff]
    %v51 = vld [vmem:[%s1 + $0x68] sm:$0xff]
    %v52 = vld [vmem:[%s1 + $0x70] sm:$0xff]
    %v53 = vld [vmem:[%s1 + $0x78] sm:$0xff]
    %v54 = vld [vmem:[%s3] sm:$0x1]
    %v56 = vperm.slane %v54, 0
    %v57 = vld [vmem:[%s5] sm:$0x1]
    %v59 = vperm.slane %v57, 0
    %v61 = vlaneseq
    %v62 = vand.u32 %v61, 127
    %v63 = vld [vmem:[%s0] sm:$0xff]
    %v64 = vld [vmem:[%s6] sm:$0xff]
    %vm65 = vcmask 261120
    %v67 = vsel %vm65, %v64, 0
    %69 = vmatpush.msra.mxu0 0.0
    %70 = vmatpush.msra.mxu0 0.0
    %71 = vmatpush.msra.mxu0 0.0
    %72 = vmatpush.msra.mxu0 0.0
    %73 = vmatpush.msra.mxu0 0.0
    %74 = vmatpush.msra.mxu0 0.0
    %75 = vmatpush.msra.mxu0 0.0
    %76 = vmatpush.msra.mxu0 0.0
    %77 = vmatpush.msra.mxu0 0.0
    %78 = vmatpush.msra.mxu0 0.0
    %79 = vmatpush.msra.mxu0 0.0
    %80 = vmatpush.msra.mxu0 0.0
    %81 = vmatpush.msra.mxu0 %v33
    %82 = vmatpush.msra.mxu0 %v32
    %83 = vmatpush.msra.mxu0 %v31
    %84 = vmatpush.msra.mxu0 %v30
    %85 = vmatmul.f32.gmra.mxu0 %v67
    %v86 = vpop.f32.mrf.mxu0
    %v87 = vadd.f32 0.0, %v86
    %88 = vdwg.mxu0
    %v89 = vadd.f32 %v63, %v87
    %v90 = vxor.u32 %v89, 2147483648
    %v91 = vmul.f32 %v90, 1.442695
    %v92 = vpow.pop %v91
    %v93 = vadd.f32 %v92, 1.0
    %v94 = vrcp.pop %v93
    %v95 = vmul.f32 %v93, %v94
    %v96 = vsub.f32 1.0, %v95
    %v97 = vmul.f32 %v94, %v96
    %v98 = vadd.f32 %v94, %v97
    %vm99 = vweird.f32 %v93
    %vm100 = vweird.f32 %v94
    %vm101 = vmor %vm99, %vm100
    %v102 = vsel %vm101, %v94, %v98
    %v103 = vand.u32 2147483647, %v93
    %vm104 = vcmp.eq.f32.partialorder %v103, 8.507059e+37
    %v105 = vand.u32 %v93, 2147483648
    %v106 = vor.u32 1.1754944e-38, %v105
    %v107 = vsel %vm104, %v106, %v102
    %v108 = vmul.f32 1.0, %v107
    %109 = vrot.lane.b32.xlu0 %v56, 64
    %v110 = vpop.permute.xlu0 %109
    %v112 = vadd.f32 %v87, %v110
    %114 = vrot.lane.b32.xlu0 %v112, 64
    %v115 = vpop.permute.xlu0 %114
    %v117 = vmul.f32 %v108, %v115
    %119 = vrot.lane.b32.xlu0 %v117, 64
    %v120 = vpop.permute.xlu0 %119
    %v122 = vadd.f32 %v63, %v120
    %v123 = vtanh.pop %v122
    %v124 = vsub.f32 1.0, %v108
    %126 = vrot.lane.b32.xlu0 %v123, 96
    %v127 = vpop.permute.xlu0 %126
    %v129 = vmul.f32 %v124, %v127
    %130 = vrot.lane.b32.xlu0 %v64, 32
    %v131 = vpop.permute.xlu0 %130
    %v133 = vmul.f32 %v108, %v131
    %v134 = vadd.f32 %v129, %v133
    %136 = vrot.lane.b32.xlu0 %v134, 96
    %v137 = vpop.permute.xlu0 %136
    %v138 = vsel %vm65, %v137, 0
    %140 = vmatpush.msra.mxu0 0.0
    %141 = vmatpush.msra.mxu0 0.0
    %142 = vmatpush.msra.mxu0 0.0
    %143 = vmatpush.msra.mxu0 0.0
    %144 = vmatpush.msra.mxu0 0.0
    %145 = vmatpush.msra.mxu0 0.0
    %146 = vmatpush.msra.mxu0 0.0
    %147 = vmatpush.msra.mxu0 0.0
    %148 = vmatpush.msra.mxu0 0.0
    %149 = vmatpush.msra.mxu0 0.0
    %150 = vmatpush.msra.mxu0 0.0
    %151 = vmatpush.msra.mxu0 0.0
    %152 = vmatpush.msra.mxu0 %v37
    %153 = vmatpush.msra.mxu0 %v36
    %154 = vmatpush.msra.mxu0 %v35
    %155 = vmatpush.msra.mxu0 %v34
    %156 = vmatmul.f32.gmra.mxu0 %v138
    %v157 = vpop.f32.mrf.mxu0
    %v158 = vadd.f32 %v59, %v157
    %159 = vdwg.mxu0
    %160 = vmax.xlane.f32.xlu0 %v158
    %v161 = vpop.xlane.xlu0 %160
    %vm162 = vcmp.eq.f32.partialorder %v158, %v161
    %v163 = vsel %vm162, %v62, 128
    %v164 = vand.u32 %v163, 65535
    %v165 = vshra.s32 %v163, 16
    %v166 = vcvt.s32.f32 %v164
    %v167 = vcvt.s32.f32 %v165
    %168 = vmin.xlane.f32.xlu0 %v167
    %v169 = vpop.xlane.xlu0 %168
    %vm170 = vcmp.eq.f32.partialorder %v167, %v169
    %v171 = vsel %vm170, %v166, inf
    %172 = vmin.xlane.f32.xlu0 %v171
    %v173 = vpop.xlane.xlu0 %172
    %v174 = vcvt.f32.s32 %v173
    %v175 = vcvt.f32.s32 %v169
    %v176 = vshll.u32 %v175, 16
    %v177 = vadd.s32 %v176, %v174
    %179 = vst.msk [vmem:[#allocation2] sm:$0xff] %vm65, %v137
    %180 = vst [vmem:[#allocation4] sm:$0xff] %v158
    %vm181 = vcmp.eq.s32.totalorder %v62, %v177
    %v182 = vsel %vm181, 1, 0
    %v183 = vcvt.s32.f32 %v182
    %184 = vmatpush.msra.mxu0 %v53
    %185 = vmatpush.msra.mxu0 %v52
    %186 = vmatpush.msra.mxu0 %v51
    %187 = vmatpush.msra.mxu0 %v50
    %188 = vmatpush.msra.mxu0 %v49
    %189 = vmatpush.msra.mxu0 %v48
    %190 = vmatpush.msra.mxu0 %v47
    %191 = vmatpush.msra.mxu0 %v46
    %192 = vmatpush.msra.mxu0 %v45
    %193 = vmatpush.msra.mxu0 %v44
    %194 = vmatpush.msra.mxu0 %v43
    %195 = vmatpush.msra.mxu0 %v42
    %196 = vmatpush.msra.mxu0 %v41
    %197 = vmatpush.msra.mxu0 %v40
    %198 = vmatpush.msra.mxu0 %v39
    %199 = vmatpush.msra.mxu0 %v38
    %200 = vmatmul.f32.gmra.mxu0 %v183
    %v201 = vpop.f32.mrf.mxu0
    %v202 = vadd.f32 0.0, %v201
    %203 = vdwg.mxu0
    %204 = vmatpush.msra.mxu0 0.0
    %205 = vmatpush.msra.mxu0 0.0
    %206 = vmatpush.msra.mxu0 0.0
    %207 = vmatpush.msra.mxu0 0.0
    %208 = vmatpush.msra.mxu0 0.0
    %209 = vmatpush.msra.mxu0 0.0
    %210 = vmatpush.msra.mxu0 0.0
    %211 = vmatpush.msra.mxu0 0.0
    %212 = vmatpush.msra.mxu0 0.0
    %213 = vmatpush.msra.mxu0 0.0
    %214 = vmatpush.msra.mxu0 0.0
    %215 = vmatpush.msra.mxu0 0.0
    %216 = vmatpush.msra.mxu0 %v33
    %217 = vmatpush.msra.mxu0 %v32
    %218 = vmatpush.msra.mxu0 %v31
    %219 = vmatpush.msra.mxu0 %v30
    %220 = vmatmul.f32.gmra.mxu0 %v138
    %v221 = vpop.f32.mrf.mxu0
    %v222 = vadd.f32 0.0, %v221
    %223 = vdwg.mxu0
    %v224 = vadd.f32 %v202, %v222
    %v225 = vxor.u32 %v224, 2147483648
    %v226 = vmul.f32 %v225, 1.442695
    %v227 = vpow.pop %v226
    %v228 = vadd.f32 %v227, 1.0
    %v229 = vrcp.pop %v228
    %v230 = vmul.f32 %v228, %v229
    %v231 = vsub.f32 1.0, %v230
    %v232 = vmul.f32 %v229, %v231
    %v233 = vadd.f32 %v229, %v232
    %vm234 = vweird.f32 %v228
    %vm235 = vweird.f32 %v229
    %vm236 = vmor %vm234, %vm235
    %v237 = vsel %vm236, %v229, %v233
    %v238 = vand.u32 2147483647, %v228
    %vm239 = vcmp.eq.f32.partialorder %v238, 8.507059e+37
    %v240 = vand.u32 %v228, 2147483648
    %v241 = vor.u32 1.1754944e-38, %v240
    %v242 = vsel %vm239, %v241, %v237
    %v243 = vmul.f32 1.0, %v242
    %v244 = vadd.f32 %v222, %v110
    %246 = vrot.lane.b32.xlu0 %v244, 64
    %v247 = vpop.permute.xlu0 %246
    %v249 = vmul.f32 %v243, %v247
    %251 = vrot.lane.b32.xlu0 %v249, 64
    %v252 = vpop.permute.xlu0 %251
    %v254 = vadd.f32 %v202, %v252
    %v255 = vtanh.pop %v254
    %v256 = vsub.f32 1.0, %v243
    %258 = vrot.lane.b32.xlu0 %v255, 96
    %v259 = vpop.permute.xlu0 %258
    %v261 = vmul.f32 %v256, %v259
    %v262 = vmul.f32 %v243, %v134
    %v263 = vadd.f32 %v261, %v262
    %265 = vrot.lane.b32.xlu0 %v263, 96
    %v266 = vpop.permute.xlu0 %265
    %v267 = vsel %vm65, %v266, 0
    %269 = vmatpush.msra.mxu0 0.0
    %270 = vmatpush.msra.mxu0 0.0
    %271 = vmatpush.msra.mxu0 0.0
    %272 = vmatpush.msra.mxu0 0.0
    %273 = vmatpush.msra.mxu0 0.0
    %274 = vmatpush.msra.mxu0 0.0
    %275 = vmatpush.msra.mxu0 0.0
    %276 = vmatpush.msra.mxu0 0.0
    %277 = vmatpush.msra.mxu0 0.0
    %278 = vmatpush.msra.mxu0 0.0
    %279 = vmatpush.msra.mxu0 0.0
    %280 = vmatpush.msra.mxu0 0.0
    %281 = vmatpush.msra.mxu0 %v37
    %282 = vmatpush.msra.mxu0 %v36
    %283 = vmatpush.msra.mxu0 %v35
    %284 = vmatpush.msra.mxu0 %v34
    %285 = vmatmul.f32.gmra.mxu0 %v267
    %v286 = vpop.f32.mrf.mxu0
    %v287 = vadd.f32 %v59, %v286
    %288 = vdwg.mxu0
    %289 = vmax.xlane.f32.xlu0 %v287
    %v290 = vpop.xlane.xlu0 %289
    %vm291 = vcmp.eq.f32.partialorder %v287, %v290
    %v292 = vsel %vm291, %v62, 128
    %v293 = vand.u32 %v292, 65535
    %v294 = vshra.s32 %v292, 16
    %v295 = vcvt.s32.f32 %v293
    %v296 = vcvt.s32.f32 %v294
    %297 = vmin.xlane.f32.xlu0 %v296
    %v298 = vpop.xlane.xlu0 %297
    %vm299 = vcmp.eq.f32.partialorder %v296, %v298
    %v300 = vsel %vm299, %v295, inf
    %301 = vmin.xlane.f32.xlu0 %v300
    %v302 = vpop.xlane.xlu0 %301
    %v303 = vcvt.f32.s32 %v302
    %v304 = vcvt.f32.s32 %v298
    %v305 = vshll.u32 %v304, 16
    %v306 = vadd.s32 %v305, %v303
    %s308 = scalar_lea.vmem [#allocation2], 8
    %309 = vst.msk [vmem:[%s308] sm:$0xff] %vm65, %v266
    %s310 = scalar_lea.vmem [#allocation4], 8
    %311 = vst [vmem:[%s310] sm:$0xff] %v287
    %vm312 = vcmp.eq.s32.totalorder %v62, %v306
    %v313 = vsel %vm312, 1, 0
    %v314 = vcvt.s32.f32 %v313
    %315 = vmatpush.msra.mxu0 %v53
    %316 = vmatpush.msra.mxu0 %v52
    %317 = vmatpush.msra.mxu0 %v51
    %318 = vmatpush.msra.mxu0 %v50
    %319 = vmatpush.msra.mxu0 %v49
    %320 = vmatpush.msra.mxu0 %v48
    %321 = vmatpush.msra.mxu0 %v47
    %322 = vmatpush.msra.mxu0 %v46
    %323 = vmatpush.msra.mxu0 %v45
    %324 = vmatpush.msra.mxu0 %v44
    %325 = vmatpush.msra.mxu0 %v43
    %326 = vmatpush.msra.mxu0 %v42
    %327 = vmatpush.msra.mxu0 %v41
    %328 = vmatpush.msra.mxu0 %v40
    %329 = vmatpush.msra.mxu0 %v39
    %330 = vmatpush.msra.mxu0 %v38
    %331 = vmatmul.f32.gmra.mxu0 %v314
    %v332 = vpop.f32.mrf.mxu0
    %v333 = vadd.f32 0.0, %v332
    %334 = vdwg.mxu0
    %335 = vmatpush.msra.mxu0 0.0
    %336 = vmatpush.msra.mxu0 0.0
    %337 = vmatpush.msra.mxu0 0.0
    %338 = vmatpush.msra.mxu0 0.0
    %339 = vmatpush.msra.mxu0 0.0
    %340 = vmatpush.msra.mxu0 0.0
    %341 = vmatpush.msra.mxu0 0.0
    %342 = vmatpush.msra.mxu0 0.0
    %343 = vmatpush.msra.mxu0 0.0
    %344 = vmatpush.msra.mxu0 0.0
    %345 = vmatpush.msra.mxu0 0.0
    %346 = vmatpush.msra.mxu0 0.0
    %347 = vmatpush.msra.mxu0 %v33
    %348 = vmatpush.msra.mxu0 %v32
    %349 = vmatpush.msra.mxu0 %v31
    %350 = vmatpush.msra.mxu0 %v30
    %351 = vmatmul.f32.gmra.mxu0 %v267
    %v352 = vpop.f32.mrf.mxu0
    %v353 = vadd.f32 0.0, %v352
    %354 = vdwg.mxu0
    %v355 = vadd.f32 %v333, %v353
    %v356 = vxor.u32 %v355, 2147483648
    %v357 = vmul.f32 %v356, 1.442695
    %v358 = vpow.pop %v357
    %v359 = vadd.f32 %v358, 1.0
    %v360 = vrcp.pop %v359
    %v361 = vmul.f32 %v359, %v360
    %v362 = vsub.f32 1.0, %v361
    %v363 = vmul.f32 %v360, %v362
    %v364 = vadd.f32 %v360, %v363
    %vm365 = vweird.f32 %v359
    %vm366 = vweird.f32 %v360
    %vm367 = vmor %vm365, %vm366
    %v368 = vsel %vm367, %v360, %v364
    %v369 = vand.u32 2147483647, %v359
    %vm370 = vcmp.eq.f32.partialorder %v369, 8.507059e+37
    %v371 = vand.u32 %v359, 2147483648
    %v372 = vor.u32 1.1754944e-38, %v371
    %v373 = vsel %vm370, %v372, %v368
    %v374 = vmul.f32 1.0, %v373
    %v375 = vadd.f32 %v353, %v110
    %377 = vrot.lane.b32.xlu0 %v375, 64
    %v378 = vpop.permute.xlu0 %377
    %v380 = vmul.f32 %v374, %v378
    %382 = vrot.lane.b32.xlu0 %v380, 64
    %v383 = vpop.permute.xlu0 %382
    %v385 = vadd.f32 %v333, %v383
    %v386 = vtanh.pop %v385
    %v387 = vsub.f32 1.0, %v374
    %389 = vrot.lane.b32.xlu0 %v386, 96
    %v390 = vpop.permute.xlu0 %389
    %v392 = vmul.f32 %v387, %v390
    %v393 = vmul.f32 %v374, %v263
    %v394 = vadd.f32 %v392, %v393
    %396 = vrot.lane.b32.xlu0 %v394, 96
    %v397 = vpop.permute.xlu0 %396
    %v398 = vsel %vm65, %v397, 0
    %400 = vmatpush.msra.mxu0 0.0
    %401 = vmatpush.msra.mxu0 0.0
    %402 = vmatpush.msra.mxu0 0.0
    %403 = vmatpush.msra.mxu0 0.0
    %404 = vmatpush.msra.mxu0 0.0
    %405 = vmatpush.msra.mxu0 0.0
    %406 = vmatpush.msra.mxu0 0.0
    %407 = vmatpush.msra.mxu0 0.0
    %408 = vmatpush.msra.mxu0 0.0
    %409 = vmatpush.msra.mxu0 0.0
    %410 = vmatpush.msra.mxu0 0.0
    %411 = vmatpush.msra.mxu0 0.0
    %412 = vmatpush.msra.mxu0 %v37
    %413 = vmatpush.msra.mxu0 %v36
    %414 = vmatpush.msra.mxu0 %v35
    %415 = vmatpush.msra.mxu0 %v34
    %416 = vmatmul.f32.gmra.mxu0 %v398
    %v417 = vpop.f32.mrf.mxu0
    %v418 = vadd.f32 %v59, %v417
    %419 = vdwg.mxu0
    %420 = vmax.xlane.f32.xlu0 %v418
    %v421 = vpop.xlane.xlu0 %420
    %vm422 = vcmp.eq.f32.partialorder %v418, %v421
    %v423 = vsel %vm422, %v62, 128
    %v424 = vand.u32 %v423, 65535
    %v425 = vshra.s32 %v423, 16
    %v426 = vcvt.s32.f32 %v424
    %v427 = vcvt.s32.f32 %v425
    %428 = vmin.xlane.f32.xlu0 %v427
    %v429 = vpop.xlane.xlu0 %428
    %vm430 = vcmp.eq.f32.partialorder %v427, %v429
    %v431 = vsel %vm430, %v426, inf
    %432 = vmin.xlane.f32.xlu0 %v431
    %v433 = vpop.xlane.xlu0 %432
    %v434 = vcvt.f32.s32 %v433
    %v435 = vcvt.f32.s32 %v429
    %v436 = vshll.u32 %v435, 16
    %v437 = vadd.s32 %v436, %v434
    %s439 = scalar_lea.vmem [#allocation2], 16
    %440 = vst.msk [vmem:[%s439] sm:$0xff] %vm65, %v397
    %s441 = scalar_lea.vmem [#allocation4], 16
    %442 = vst [vmem:[%s441] sm:$0xff] %v418
    %vm443 = vcmp.eq.s32.totalorder %v62, %v437
    %v444 = vsel %vm443, 1, 0
    %v445 = vcvt.s32.f32 %v444
    %446 = vmatpush.msra.mxu0 %v53
    %447 = vmatpush.msra.mxu0 %v52
    %448 = vmatpush.msra.mxu0 %v51
    %449 = vmatpush.msra.mxu0 %v50
    %450 = vmatpush.msra.mxu0 %v49
    %451 = vmatpush.msra.mxu0 %v48
    %452 = vmatpush.msra.mxu0 %v47
    %453 = vmatpush.msra.mxu0 %v46
    %454 = vmatpush.msra.mxu0 %v45
    %455 = vmatpush.msra.mxu0 %v44
    %456 = vmatpush.msra.mxu0 %v43
    %457 = vmatpush.msra.mxu0 %v42
    %458 = vmatpush.msra.mxu0 %v41
    %459 = vmatpush.msra.mxu0 %v40
    %460 = vmatpush.msra.mxu0 %v39
    %461 = vmatpush.msra.mxu0 %v38
    %462 = vmatmul.f32.gmra.mxu0 %v445
    %v463 = vpop.f32.mrf.mxu0
    %v464 = vadd.f32 0.0, %v463
    %465 = vdwg.mxu0
    %466 = vmatpush.msra.mxu0 0.0
    %467 = vmatpush.msra.mxu0 0.0
    %468 = vmatpush.msra.mxu0 0.0
    %469 = vmatpush.msra.mxu0 0.0
    %470 = vmatpush.msra.mxu0 0.0
    %471 = vmatpush.msra.mxu0 0.0
    %472 = vmatpush.msra.mxu0 0.0
    %473 = vmatpush.msra.mxu0 0.0
    %474 = vmatpush.msra.mxu0 0.0
    %475 = vmatpush.msra.mxu0 0.0
    %476 = vmatpush.msra.mxu0 0.0
    %477 = vmatpush.msra.mxu0 0.0
    %478 = vmatpush.msra.mxu0 %v33
    %479 = vmatpush.msra.mxu0 %v32
    %480 = vmatpush.msra.mxu0 %v31
    %481 = vmatpush.msra.mxu0 %v30
    %482 = vmatmul.f32.gmra.mxu0 %v398
    %v483 = vpop.f32.mrf.mxu0
    %v484 = vadd.f32 0.0, %v483
    %485 = vdwg.mxu0
    %v486 = vadd.f32 %v464, %v484
    %v487 = vxor.u32 %v486, 2147483648
    %v488 = vmul.f32 %v487, 1.442695
    %v489 = vpow.pop %v488
    %v490 = vadd.f32 %v489, 1.0
    %v491 = vrcp.pop %v490
    %v492 = vmul.f32 %v490, %v491
    %v493 = vsub.f32 1.0, %v492
    %v494 = vmul.f32 %v491, %v493
    %v495 = vadd.f32 %v491, %v494
    %vm496 = vweird.f32 %v490
    %vm497 = vweird.f32 %v491
    %vm498 = vmor %vm496, %vm497
    %v499 = vsel %vm498, %v491, %v495
    %v500 = vand.u32 2147483647, %v490
    %vm501 = vcmp.eq.f32.partialorder %v500, 8.507059e+37
    %v502 = vand.u32 %v490, 2147483648
    %v503 = vor.u32 1.1754944e-38, %v502
    %v504 = vsel %vm501, %v503, %v499
    %v505 = vmul.f32 1.0, %v504
    %v506 = vadd.f32 %v484, %v110
    %508 = vrot.lane.b32.xlu0 %v506, 64
    %v509 = vpop.permute.xlu0 %508
    %v511 = vmul.f32 %v505, %v509
    %513 = vrot.lane.b32.xlu0 %v511, 64
    %v514 = vpop.permute.xlu0 %513
    %v516 = vadd.f32 %v464, %v514
    %v517 = vtanh.pop %v516
    %v518 = vsub.f32 1.0, %v505
    %520 = vrot.lane.b32.xlu0 %v517, 96
    %v521 = vpop.permute.xlu0 %520
    %v523 = vmul.f32 %v518, %v521
    %v524 = vmul.f32 %v505, %v394
    %v525 = vadd.f32 %v523, %v524
    %527 = vrot.lane.b32.xlu0 %v525, 96
    %v528 = vpop.permute.xlu0 %527
    %v529 = vsel %vm65, %v528, 0
    %531 = vmatpush.msra.mxu0 0.0
    %532 = vmatpush.msra.mxu0 0.0
    %533 = vmatpush.msra.mxu0 0.0
    %534 = vmatpush.msra.mxu0 0.0
    %535 = vmatpush.msra.mxu0 0.0
    %536 = vmatpush.msra.mxu0 0.0
    %537 = vmatpush.msra.mxu0 0.0
    %538 = vmatpush.msra.mxu0 0.0
    %539 = vmatpush.msra.mxu0 0.0
    %540 = vmatpush.msra.mxu0 0.0
    %541 = vmatpush.msra.mxu0 0.0
    %542 = vmatpush.msra.mxu0 0.0
    %543 = vmatpush.msra.mxu0 %v37
    %544 = vmatpush.msra.mxu0 %v36
    %545 = vmatpush.msra.mxu0 %v35
    %546 = vmatpush.msra.mxu0 %v34
    %547 = vmatmul.f32.gmra.mxu0 %v529
    %v548 = vpop.f32.mrf.mxu0
    %v549 = vadd.f32 %v59, %v548
    %550 = vdwg.mxu0
    %551 = vmax.xlane.f32.xlu0 %v549
    %v552 = vpop.xlane.xlu0 %551
    %vm553 = vcmp.eq.f32.partialorder %v549, %v552
    %v554 = vsel %vm553, %v62, 128
    %v555 = vand.u32 %v554, 65535
    %v556 = vshra.s32 %v554, 16
    %v557 = vcvt.s32.f32 %v555
    %v558 = vcvt.s32.f32 %v556
    %559 = vmin.xlane.f32.xlu0 %v558
    %v560 = vpop.xlane.xlu0 %559
    %vm561 = vcmp.eq.f32.partialorder %v558, %v560
    %v562 = vsel %vm561, %v557, inf
    %563 = vmin.xlane.f32.xlu0 %v562
    %v564 = vpop.xlane.xlu0 %563
    %v565 = vcvt.f32.s32 %v564
    %v566 = vcvt.f32.s32 %v560
    %v567 = vshll.u32 %v566, 16
    %v568 = vadd.s32 %v567, %v565
    %s570 = scalar_lea.vmem [#allocation2], 24
    %571 = vst.msk [vmem:[%s570] sm:$0xff] %vm65, %v528
    %s572 = scalar_lea.vmem [#allocation4], 24
    %573 = vst [vmem:[%s572] sm:$0xff] %v549
    %vm574 = vcmp.eq.s32.totalorder %v62, %v568
    %v575 = vsel %vm574, 1, 0
    %v576 = vcvt.s32.f32 %v575
    %577 = vmatpush.msra.mxu0 %v53
    %578 = vmatpush.msra.mxu0 %v52
    %579 = vmatpush.msra.mxu0 %v51
    %580 = vmatpush.msra.mxu0 %v50
    %581 = vmatpush.msra.mxu0 %v49
    %582 = vmatpush.msra.mxu0 %v48
    %583 = vmatpush.msra.mxu0 %v47
    %584 = vmatpush.msra.mxu0 %v46
    %585 = vmatpush.msra.mxu0 %v45
    %586 = vmatpush.msra.mxu0 %v44
    %587 = vmatpush.msra.mxu0 %v43
    %588 = vmatpush.msra.mxu0 %v42
    %589 = vmatpush.msra.mxu0 %v41
    %590 = vmatpush.msra.mxu0 %v40
    %591 = vmatpush.msra.mxu0 %v39
    %592 = vmatpush.msra.mxu0 %v38
    %593 = vmatmul.f32.gmra.mxu0 %v576
    %v594 = vpop.f32.mrf.mxu0
    %v595 = vadd.f32 0.0, %v594
    %596 = vdwg.mxu0
    %597 = vmatpush.msra.mxu0 0.0
    %598 = vmatpush.msra.mxu0 0.0
    %599 = vmatpush.msra.mxu0 0.0
    %600 = vmatpush.msra.mxu0 0.0
    %601 = vmatpush.msra.mxu0 0.0
    %602 = vmatpush.msra.mxu0 0.0
    %603 = vmatpush.msra.mxu0 0.0
    %604 = vmatpush.msra.mxu0 0.0
    %605 = vmatpush.msra.mxu0 0.0
    %606 = vmatpush.msra.mxu0 0.0
    %607 = vmatpush.msra.mxu0 0.0
    %608 = vmatpush.msra.mxu0 0.0
    %609 = vmatpush.msra.mxu0 %v33
    %610 = vmatpush.msra.mxu0 %v32
    %611 = vmatpush.msra.mxu0 %v31
    %612 = vmatpush.msra.mxu0 %v30
    %613 = vmatmul.f32.gmra.mxu0 %v529
    %v614 = vpop.f32.mrf.mxu0
    %v615 = vadd.f32 0.0, %v614
    %616 = vdwg.mxu0
    %v617 = vadd.f32 %v595, %v615
    %v618 = vxor.u32 %v617, 2147483648
    %v619 = vmul.f32 %v618, 1.442695
    %v620 = vpow.pop %v619
    %v621 = vadd.f32 %v620, 1.0
    %v622 = vrcp.pop %v621
    %v623 = vmul.f32 %v621, %v622
    %v624 = vsub.f32 1.0, %v623
    %v625 = vmul.f32 %v622, %v624
    %v626 = vadd.f32 %v622, %v625
    %vm627 = vweird.f32 %v621
    %vm628 = vweird.f32 %v622
    %vm629 = vmor %vm627, %vm628
    %v630 = vsel %vm629, %v622, %v626
    %v631 = vand.u32 2147483647, %v621
    %vm632 = vcmp.eq.f32.partialorder %v631, 8.507059e+37
    %v633 = vand.u32 %v621, 2147483648
    %v634 = vor.u32 1.1754944e-38, %v633
    %v635 = vsel %vm632, %v634, %v630
    %v636 = vmul.f32 1.0, %v635
    %v637 = vadd.f32 %v615, %v110
    %639 = vrot.lane.b32.xlu0 %v637, 64
    %v640 = vpop.permute.xlu0 %639
    %v642 = vmul.f32 %v636, %v640
    %644 = vrot.lane.b32.xlu0 %v642, 64
    %v645 = vpop.permute.xlu0 %644
    %v647 = vadd.f32 %v595, %v645
    %v648 = vtanh.pop %v647
    %v649 = vsub.f32 1.0, %v636
    %651 = vrot.lane.b32.xlu0 %v648, 96
    %v652 = vpop.permute.xlu0 %651
    %v654 = vmul.f32 %v649, %v652
    %v655 = vmul.f32 %v636, %v525
    %v656 = vadd.f32 %v654, %v655
    %658 = vrot.lane.b32.xlu0 %v656, 96
    %v659 = vpop.permute.xlu0 %658
    %v660 = vsel %vm65, %v659, 0
    %662 = vmatpush.msra.mxu0 0.0
    %663 = vmatpush.msra.mxu0 0.0
    %664 = vmatpush.msra.mxu0 0.0
    %665 = vmatpush.msra.mxu0 0.0
    %666 = vmatpush.msra.mxu0 0.0
    %667 = vmatpush.msra.mxu0 0.0
    %668 = vmatpush.msra.mxu0 0.0
    %669 = vmatpush.msra.mxu0 0.0
    %670 = vmatpush.msra.mxu0 0.0
    %671 = vmatpush.msra.mxu0 0.0
    %672 = vmatpush.msra.mxu0 0.0
    %673 = vmatpush.msra.mxu0 0.0
    %674 = vmatpush.msra.mxu0 %v37
    %675 = vmatpush.msra.mxu0 %v36
    %676 = vmatpush.msra.mxu0 %v35
    %677 = vmatpush.msra.mxu0 %v34
    %678 = vmatmul.f32.gmra.mxu0 %v660
    %v679 = vpop.f32.mrf.mxu0
    %v680 = vadd.f32 %v59, %v679
    %681 = vdwg.mxu0
    %s683 = scalar_lea.vmem [#allocation2], 32
    %684 = vst.msk [vmem:[%s683] sm:$0xff] %vm65, %v659
    %s685 = scalar_lea.vmem [#allocation4], 32
    %686 = vst [vmem:[%s685] sm:$0xff] %v680
    // Predicated region
    $region30: #{tpu_custom_call.1} parent=1 // pred_check
      _
    $region31: #{tpu_custom_call.1} parent=1 // pred_check_branch
      %688 = sbr.rel (0) target = $region33
    $region32: #{tpu_custom_call.1} parent=1 // pred_region
      %690 = vsyncadd [#allocation3], 0
      %s691 = sshll.u32 [#allocation2], 4
      %s692 = int_to_ptr.vmem [resolvable:$true] %s691
      %s693 = sshll.u32 %s7, 4
      %s694 = int_to_ptr.hbm [resolvable:$true] %s693
      %699 = dma.vmem_to_hbm [thread:$0]  %s692, 640, %s694, [#allocation3], 128, 128, 8
    $region33: #{tpu_custom_call.1} parent=1 // pred_fallthru
      _
    // Predicated region
    $region34: #{tpu_custom_call.1} parent=1 // pred_check
      _
    $region35: #{tpu_custom_call.1} parent=1 // pred_check_branch
      %701 = sbr.rel (0) target = $region37
    $region36: #{tpu_custom_call.1} parent=1 // pred_region
      %703 = vsyncadd [#allocation5], 0
      %s704 = sshll.u32 [#allocation4], 4
      %s705 = int_to_ptr.vmem [resolvable:$true] %s704
      %s706 = sshll.u32 %s8, 4
      %s707 = int_to_ptr.hbm [resolvable:$true] %s706
      %712 = dma.vmem_to_hbm [thread:$0]  %s705, 640, %s707, [#allocation5], 128, 128, 8
    $region37: #{tpu_custom_call.1} parent=1 // pred_fallthru
      _
    // Predicated region
    $region38: #{tpu_custom_call.1} parent=1 // pred_check
      _
    $region39: #{tpu_custom_call.1} parent=1 // pred_check_branch
      %714 = sbr.rel (0) target = $region41
    $region40: #{tpu_custom_call.1} parent=1 // pred_region
      %716 = dma.done [#allocation3], 640
    $region41: #{tpu_custom_call.1} parent=1 // pred_fallthru
      _
    // Predicated region
    $region42: #{tpu_custom_call.1} parent=1 // pred_check
      _
    $region43: #{tpu_custom_call.1} parent=1 // pred_check_branch
      %718 = sbr.rel (0) target = $region45
    $region44: #{tpu_custom_call.1} parent=1 // pred_region
      %720 = dma.done [#allocation5], 640
    $region45: #{tpu_custom_call.1} parent=1 // pred_fallthru
      _
    %721 = vsyncpa [#allocation3], 1
    %722 = vsyncpa [#allocation5], 1

</llo_original>
